<compile_context>
chip_gen: v6e
topology: v6e:2x2x1
jax: 0.10.0
libtpu: 0.0.40
codegen_flags: <defaults>
</compile_context>

<pallas_src>
import math
import numpy as np
import jax
import jax.numpy as jnp
from jax.experimental import pallas as pl
from jax.experimental.pallas import tpu as pltpu

# ---- model hyperparameters (small, consistent with the module) -------------
HIDDEN_DIM = 32
NUM_HEADS = 4
HEAD_DIM = HIDDEN_DIM // NUM_HEADS
MLP_RATIO = 2.0
INNER_DIM = int(HIDDEN_DIM * MLP_RATIO)
BATCH = 2
SEQ = 8
EPS = 1e-5

D = HIDDEN_DIM
I = INNER_DIM
BN = BATCH * SEQ           # 16 flattened tokens
HBN = NUM_HEADS * BN       # 64 rows in the head-batched score layout

# column offsets inside the packed (64, 272) weight/mask slab
_QKV0, _QKV1 = 0, 3 * D                 # fused Wq|Wk|Wv (rows 0:32)    :   0 ..  96
_WP0, _WP1 = 3 * D, 4 * D               # Wproj (rows 0:32)             :  96 .. 128
_W10, _W11 = 4 * D, 4 * D + I           # fc1 (rows 0:32)               : 128 .. 192
_W20, _W21 = 4 * D + I, 4 * D + I + D   # fc2 (rows 0:64, single K=64)  : 192 .. 224
_HS0, _HS1 = _W21, _W21 + D             # head-select mask (64,32)      : 224 .. 256
_BM0, _BM1 = _HS1, _HS1 + BN            # batch block-diag mask (64,16) : 256 .. 272
W_COLS = _BM1                           # 272

VEC_ROWS = 10
VEC_COLS = 128


def _layer_norm(v, g, b, inv_n):
    # de-serialized LN: both reductions are independent (issue concurrently on the XLU),
    # gamma folded into the rsqrt factor.
    s1 = jnp.sum(v, axis=-1, keepdims=True)
    s2 = jnp.sum(v * v, axis=-1, keepdims=True)
    mu = s1 * inv_n
    var = s2 * inv_n - mu * mu
    f = jax.lax.rsqrt(var + EPS) * g
    return v * f + (b - mu * f)


def _gelu_exact(x):
    # PyTorch nn.GELU() default (erf-based, non-approximate)
    return 0.5 * x * (1.0 + jax.lax.erf(x * (1.0 / math.sqrt(2.0))))


def _block_kernel(x_ref, w_ref, vec_ref, o_ref):
    x = x_ref[...].astype(jnp.float32)          # (BN, D) = (16, 32)
    V = vec_ref[...]                            # (10, 128) packed vector slab

    n1g, n1b = V[0, :D], V[1, :D]
    bqkv = V[2, :3 * D]                         # bq (pre-scaled) | bk | bv
    bp = V[3, :D]
    n2g, n2b = V[4, :D], V[5, :D]
    b1 = V[6, :I]
    lng, lnb = V[7, :I], V[8, :I]
    b2 = V[9, :D]

    wqkv = w_ref[0:D, _QKV0:_QKV1]              # (32, 96)
    wp = w_ref[0:D, _WP0:_WP1]                  # (32, 32)
    w1 = w_ref[0:D, _W10:_W11]                  # (32, 64)
    w2 = w_ref[:, _W20:_W21]                    # (64, 32)  single K=64 operand
    hsel = w_ref[:, _HS0:_HS1]                  # (64, 32)  1/0 head-select mask
    bmask = w_ref[:, _BM0:_BM1]                 # (64, 16)  additive block-diag batch mask

    # --- norm1 + fused QKV projection (softmax scale folded into Wq/bq) -----
    xn = _layer_norm(x, n1g, n1b, 1.0 / D)
    qkv = jnp.dot(xn, wqkv, preferred_element_type=jnp.float32) + bqkv
    q, k, v = qkv[:, :D], qkv[:, D:2 * D], qkv[:, 2 * D:3 * D]

    # --- head-batched attention: block-diagonal Q over heads -----------------
    # qb row block h holds head h's query slice in its own columns, zeros elsewhere,
    # so ONE matmul against k produces all per-head score blocks stacked on sublanes.
    qb = jnp.concatenate([q] * NUM_HEADS, axis=0) * hsel          # (64, 32)
    s = jax.lax.dot_general(qb, k, (((1,), (1,)), ((), ())),
                            preferred_element_type=jnp.float32) + bmask   # (64, 16)
    p = jnp.exp(s)                               # masked entries underflow to exactly 0
    p = p * pl.reciprocal(jnp.sum(p, axis=-1, keepdims=True), approx=False)
    pv = jnp.dot(p, v, preferred_element_type=jnp.float32) * hsel  # (64, 32)
    # fold the 4 head row-blocks back into the concatenated (16, 32) attention output
    ao = pv[0:BN] + pv[BN:2 * BN] + pv[2 * BN:3 * BN] + pv[3 * BN:4 * BN]
    attn = jnp.dot(ao, wp, preferred_element_type=jnp.float32) + bp

    x1 = x + attn                                # residual 1

    # --- norm2 + MLP ----------------------------------------------------------
    x2n = _layer_norm(x1, n2g, n2b, 1.0 / D)
    h1 = jnp.dot(x2n, w1, preferred_element_type=jnp.float32) + b1
    h1 = _gelu_exact(h1)
    h1 = _layer_norm(h1, lng, lnb, 1.0 / I)
    h2 = jnp.dot(h1, w2, preferred_element_type=jnp.float32) + b2   # single K=64 matmul

    o_ref[...] = (x1 + h2).astype(o_ref.dtype)   # residual 2


def pack_params(p):
    """One-time wrapper-side packing: (64, 272) weight/mask slab + (10, 128) vector slab."""
    scale = 1.0 / math.sqrt(HEAD_DIM)

    # rows 0:32 carry the D-row weights; rows 32:64 are zero padding for those columns
    top = jnp.concatenate(
        [p["wq"] * scale, p["wk"], p["wv"], p["wp"], p["w1"]], axis=1).astype(jnp.float32)
    top = jnp.concatenate([top, jnp.zeros_like(top)], axis=0)       # (64, 192)

    # static masks, precomputed once (never rebuilt inside the kernel)
    r = np.arange(HBN)
    hsel = (r[:, None] // BN == np.arange(D)[None, :] // HEAD_DIM).astype(np.float32)
    bmask = np.where((r[:, None] % BN) // SEQ == np.arange(BN)[None, :] // SEQ,
                     0.0, -1e30).astype(np.float32)

    w_slab = jnp.concatenate(
        [top, p["w2"].astype(jnp.float32), jnp.asarray(hsel), jnp.asarray(bmask)], axis=1)
    assert w_slab.shape == (HBN, W_COLS)

    def row(v):
        v = jnp.asarray(v, jnp.float32).reshape(-1)
        return jnp.pad(v, (0, VEC_COLS - v.shape[0]))

    vec_slab = jnp.stack([
        row(p["n1g"]), row(p["n1b"]),
        row(jnp.concatenate([p["bq"].reshape(-1) * scale,
                             p["bk"].reshape(-1), p["bv"].reshape(-1)])),
        row(p["bp"]),
        row(p["n2g"]), row(p["n2b"]),
        row(p["b1"]),
        row(p["lng"]), row(p["lnb"]),
        row(p["b2"]),
    ])
    assert vec_slab.shape == (VEC_ROWS, VEC_COLS)
    return w_slab, vec_slab


def self_attention_block(x, w_slab, vec_slab):
    B, N, Dd = x.shape
    x2d = x.reshape(B * N, Dd)                  # collapse batch: single kernel invocation
    vmem = pltpu.MemorySpace.VMEM
    out2d = pl.pallas_call(
        _block_kernel,
        out_shape=jax.ShapeDtypeStruct((B * N, Dd), x.dtype),
        in_specs=[pl.BlockSpec(memory_space=vmem)] * 3,
        out_specs=pl.BlockSpec(memory_space=vmem),
    )(x2d, w_slab, vec_slab)
    return out2d.reshape(B, N, Dd)


# --------------------------- pure-JAX reference ------------------------------
def reference(x, p):
    def ln(v, g, b):
        mu = jnp.mean(v, axis=-1, keepdims=True)
        var = jnp.mean((v - mu) ** 2, axis=-1, keepdims=True)
        return (v - mu) * jax.lax.rsqrt(var + EPS) * g[0] + b[0]

    B, N, Dd = x.shape
    xn = ln(x, p["n1g"], p["n1b"])
    q = xn @ p["wq"] + p["bq"][0]
    k = xn @ p["wk"] + p["bk"][0]
    v = xn @ p["wv"] + p["bv"][0]
    q = q.reshape(B, N, NUM_HEADS, HEAD_DIM).transpose(0, 2, 1, 3)
    k = k.reshape(B, N, NUM_HEADS, HEAD_DIM).transpose(0, 2, 1, 3)
    v = v.reshape(B, N, NUM_HEADS, HEAD_DIM).transpose(0, 2, 1, 3)
    s = jnp.einsum("bhqd,bhkd->bhqk", q, k) / math.sqrt(HEAD_DIM)
    a = jax.nn.softmax(s, axis=-1)
    ao = jnp.einsum("bhqk,bhkd->bhqd", a, v).transpose(0, 2, 1, 3).reshape(B, N, Dd)
    ao = ao @ p["wp"] + p["bp"][0]
    x1 = x + ao
    x2n = ln(x1, p["n2g"], p["n2b"])
    h = x2n @ p["w1"] + p["b1"][0]
    h = 0.5 * h * (1.0 + jax.lax.erf(h / math.sqrt(2.0)))
    h = ln(h, p["lng"], p["lnb"])
    h = h @ p["w2"] + p["b2"][0]
    return x1 + h


# ------------------------------------ main -----------------------------------
if __name__ == "__main__":
    key = jax.random.PRNGKey(0)
    keys = jax.random.split(key, 16)

    def lin(k, fan_in, fan_out):
        # deterministic synthetic init (uniform, PyTorch-Linear-style bound)
        bound = 1.0 / math.sqrt(fan_in)
        kw, kb = jax.random.split(k)
        w = jax.random.uniform(kw, (fan_in, fan_out), jnp.float32, -bound, bound)
        b = jax.random.uniform(kb, (1, fan_out), jnp.float32, -bound, bound)
        return w, b

    wq, bq = lin(keys[0], D, D)
    wk, bk = lin(keys[1], D, D)
    wv, bv = lin(keys[2], D, D)
    wp, bp = lin(keys[3], D, D)
    w1, b1 = lin(keys[4], D, I)
    w2, b2 = lin(keys[5], I, D)

    params = dict(
        wq=wq, bq=bq, wk=wk, bk=bk, wv=wv, bv=bv, wp=wp, bp=bp,
        w1=w1, b1=b1, w2=w2, b2=b2,
        n1g=jnp.ones((1, D), jnp.float32), n1b=jnp.zeros((1, D), jnp.float32),
        n2g=jnp.ones((1, D), jnp.float32), n2b=jnp.zeros((1, D), jnp.float32),
        lng=jnp.ones((1, I), jnp.float32), lnb=jnp.zeros((1, I), jnp.float32),
    )

    x = jax.random.normal(keys[6], (BATCH, SEQ, D), jnp.float32)

    # one-time wrapper-side packing of all params + static masks into two lane-dense slabs
    w_slab, vec_slab = pack_params(params)

    out = self_attention_block(x, w_slab, vec_slab)
    out = jax.block_until_ready(out)

    ref = jax.block_until_ready(reference(x, params))
    assert jnp.allclose(out, ref, atol=1e-4, rtol=1e-4), "mismatch vs reference"

    # TODO(synk): dropout (p=0.0) and the MoE expert branch (expert_idx=None) are no-ops
    # in this forward pass and are intentionally not implemented in the kernel.

    print("KERNEL_OK")
</pallas_src>

<mosaic_0001>
module attributes {stable_mosaic.version = 11 : i64} {
  func.func @_block_kernel(%arg0: memref<16x32xf32, #tpu.memory_space<vmem>>, %arg1: memref<64x272xf32, #tpu.memory_space<vmem>>, %arg2: memref<10x128xf32, #tpu.memory_space<vmem>>, %arg3: memref<16x32xf32, #tpu.memory_space<vmem>>) attributes {dimension_semantics = [], scalar_prefetch = 0 : i64, scratch_operands = 0 : i64, tpu.core_type = #tpu.core_type<tc>} {
    %c0 = arith.constant 0 : index
    %c0_0 = arith.constant 0 : index
    %0 = vector.load %arg0[%c0, %c0_0] : memref<16x32xf32, #tpu.memory_space<vmem>>, vector<16x32xf32>
    %c0_1 = arith.constant 0 : index
    %c0_2 = arith.constant 0 : index
    %1 = vector.load %arg2[%c0_1, %c0_2] : memref<10x128xf32, #tpu.memory_space<vmem>>, vector<10x128xf32>
    %2 = vector.extract_strided_slice %1 {offsets = [0, 0], sizes = [1, 32], strides = [1, 1]} : vector<10x128xf32> to vector<1x32xf32>
    %3 = vector.shape_cast %2 : vector<1x32xf32> to vector<32xf32>
    %4 = vector.extract_strided_slice %1 {offsets = [1, 0], sizes = [1, 32], strides = [1, 1]} : vector<10x128xf32> to vector<1x32xf32>
    %5 = vector.shape_cast %4 : vector<1x32xf32> to vector<32xf32>
    %6 = vector.extract_strided_slice %1 {offsets = [2, 0], sizes = [1, 96], strides = [1, 1]} : vector<10x128xf32> to vector<1x96xf32>
    %7 = vector.shape_cast %6 : vector<1x96xf32> to vector<96xf32>
    %8 = vector.extract_strided_slice %1 {offsets = [3, 0], sizes = [1, 32], strides = [1, 1]} : vector<10x128xf32> to vector<1x32xf32>
    %9 = vector.shape_cast %8 : vector<1x32xf32> to vector<32xf32>
    %10 = vector.extract_strided_slice %1 {offsets = [4, 0], sizes = [1, 32], strides = [1, 1]} : vector<10x128xf32> to vector<1x32xf32>
    %11 = vector.shape_cast %10 : vector<1x32xf32> to vector<32xf32>
    %12 = vector.extract_strided_slice %1 {offsets = [5, 0], sizes = [1, 32], strides = [1, 1]} : vector<10x128xf32> to vector<1x32xf32>
    %13 = vector.shape_cast %12 : vector<1x32xf32> to vector<32xf32>
    %14 = vector.extract_strided_slice %1 {offsets = [6, 0], sizes = [1, 64], strides = [1, 1]} : vector<10x128xf32> to vector<1x64xf32>
    %15 = vector.shape_cast %14 : vector<1x64xf32> to vector<64xf32>
    %16 = vector.extract_strided_slice %1 {offsets = [7, 0], sizes = [1, 64], strides = [1, 1]} : vector<10x128xf32> to vector<1x64xf32>
    %17 = vector.shape_cast %16 : vector<1x64xf32> to vector<64xf32>
    %18 = vector.extract_strided_slice %1 {offsets = [8, 0], sizes = [1, 64], strides = [1, 1]} : vector<10x128xf32> to vector<1x64xf32>
    %19 = vector.shape_cast %18 : vector<1x64xf32> to vector<64xf32>
    %20 = vector.extract_strided_slice %1 {offsets = [9, 0], sizes = [1, 32], strides = [1, 1]} : vector<10x128xf32> to vector<1x32xf32>
    %21 = vector.shape_cast %20 : vector<1x32xf32> to vector<32xf32>
    %c0_3 = arith.constant 0 : index
    %c0_4 = arith.constant 0 : index
    %22 = vector.load %arg1[%c0_3, %c0_4] : memref<64x272xf32, #tpu.memory_space<vmem>>, vector<32x96xf32>
    %c0_5 = arith.constant 0 : index
    %c96 = arith.constant 96 : index
    %23 = vector.load %arg1[%c0_5, %c96] : memref<64x272xf32, #tpu.memory_space<vmem>>, vector<32x32xf32>
    %c0_6 = arith.constant 0 : index
    %c128 = arith.constant 128 : index
    %24 = vector.load %arg1[%c0_6, %c128] : memref<64x272xf32, #tpu.memory_space<vmem>>, vector<32x64xf32>
    %c0_7 = arith.constant 0 : index
    %c192 = arith.constant 192 : index
    %25 = vector.load %arg1[%c0_7, %c192] : memref<64x272xf32, #tpu.memory_space<vmem>>, vector<64x32xf32>
    %c0_8 = arith.constant 0 : index
    %c224 = arith.constant 224 : index
    %26 = vector.load %arg1[%c0_8, %c224] : memref<64x272xf32, #tpu.memory_space<vmem>>, vector<64x32xf32>
    %c0_9 = arith.constant 0 : index
    %c256 = arith.constant 256 : index
    %27 = vector.load %arg1[%c0_9, %c256] : memref<64x272xf32, #tpu.memory_space<vmem>>, vector<64x16xf32>
    %cst = arith.constant dense<0.000000e+00> : vector<16xf32>
    %28 = vector.multi_reduction <add>, %0, %cst [1] : vector<16x32xf32> to vector<16xf32>
    %29 = vector.shape_cast %28 : vector<16xf32> to vector<16x1xf32>
    %30 = arith.mulf %0, %0 : vector<16x32xf32>
    %cst_10 = arith.constant dense<0.000000e+00> : vector<16xf32>
    %31 = vector.multi_reduction <add>, %30, %cst_10 [1] : vector<16x32xf32> to vector<16xf32>
    %32 = vector.shape_cast %31 : vector<16xf32> to vector<16x1xf32>
    %cst_11 = arith.constant 3.125000e-02 : f32
    %33 = vector.broadcast %cst_11 : f32 to vector<16x1xf32>
    %34 = arith.mulf %29, %33 : vector<16x1xf32>
    %cst_12 = arith.constant 3.125000e-02 : f32
    %35 = vector.broadcast %cst_12 : f32 to vector<16x1xf32>
    %36 = arith.mulf %32, %35 : vector<16x1xf32>
    %37 = arith.mulf %34, %34 : vector<16x1xf32>
    %38 = arith.subf %36, %37 : vector<16x1xf32>
    %cst_13 = arith.constant 9.99999974E-6 : f32
    %39 = vector.broadcast %cst_13 : f32 to vector<16x1xf32>
    %40 = arith.addf %38, %39 : vector<16x1xf32>
    %41 = math.rsqrt %40 : vector<16x1xf32>
    %42 = vector.shape_cast %3 : vector<32xf32> to vector<1x32xf32>
    %43 = vector.broadcast %41 : vector<16x1xf32> to vector<16x32xf32>
    %44 = vector.broadcast %42 : vector<1x32xf32> to vector<16x32xf32>
    %45 = arith.mulf %43, %44 : vector<16x32xf32>
    %46 = arith.mulf %0, %45 : vector<16x32xf32>
    %47 = vector.broadcast %34 : vector<16x1xf32> to vector<16x32xf32>
    %48 = arith.mulf %47, %45 : vector<16x32xf32>
    %49 = vector.shape_cast %5 : vector<32xf32> to vector<1x32xf32>
    %50 = vector.broadcast %49 : vector<1x32xf32> to vector<16x32xf32>
    %51 = arith.subf %50, %48 : vector<16x32xf32>
    %52 = arith.addf %46, %51 : vector<16x32xf32>
    %cst_14 = arith.constant dense<0.000000e+00> : vector<16x96xf32>
    %53 = tpu.matmul %52, %22, %cst_14 {dimension_numbers = #tpu.dot_dimension_numbers<[1], [0], [0], [1], [0, 0, 1, 1], [], []>} : vector<16x32xf32>, vector<32x96xf32>, vector<16x96xf32> -> vector<16x96xf32>
    %54 = vector.shape_cast %7 : vector<96xf32> to vector<1x96xf32>
    %55 = vector.broadcast %54 : vector<1x96xf32> to vector<16x96xf32>
    %56 = arith.addf %53, %55 : vector<16x96xf32>
    %57 = vector.extract_strided_slice %56 {offsets = [0, 0], sizes = [16, 32], strides = [1, 1]} : vector<16x96xf32> to vector<16x32xf32>
    %58 = vector.extract_strided_slice %56 {offsets = [0, 32], sizes = [16, 32], strides = [1, 1]} : vector<16x96xf32> to vector<16x32xf32>
    %59 = vector.extract_strided_slice %56 {offsets = [0, 64], sizes = [16, 32], strides = [1, 1]} : vector<16x96xf32> to vector<16x32xf32>
    %60 = tpu.concatenate %57, %57, %57, %57 in 0 : vector<16x32xf32>, vector<16x32xf32>, vector<16x32xf32>, vector<16x32xf32> -> vector<64x32xf32>
    %61 = arith.mulf %60, %26 : vector<64x32xf32>
    %cst_15 = arith.constant dense<0.000000e+00> : vector<64x16xf32>
    %62 = tpu.matmul %61, %58, %cst_15 {dimension_numbers = #tpu.dot_dimension_numbers<[1], [1], [0], [0], [0, 0, 1, 0], [], []>} : vector<64x32xf32>, vector<16x32xf32>, vector<64x16xf32> -> vector<64x16xf32>
    %63 = arith.addf %62, %27 : vector<64x16xf32>
    %64 = math.exp %63 : vector<64x16xf32>
    %cst_16 = arith.constant dense<0.000000e+00> : vector<64xf32>
    %65 = vector.multi_reduction <add>, %64, %cst_16 [1] : vector<64x16xf32> to vector<64xf32>
    %66 = vector.shape_cast %65 : vector<64xf32> to vector<64x1xf32>
    %67 = tpu.reciprocal %66 : vector<64x1xf32> -> vector<64x1xf32>
    %68 = vector.broadcast %67 : vector<64x1xf32> to vector<64x16xf32>
    %69 = arith.mulf %64, %68 : vector<64x16xf32>
    %cst_17 = arith.constant dense<0.000000e+00> : vector<64x32xf32>
    %70 = tpu.matmul %69, %59, %cst_17 {dimension_numbers = #tpu.dot_dimension_numbers<[1], [0], [0], [1], [0, 0, 1, 1], [], []>} : vector<64x16xf32>, vector<16x32xf32>, vector<64x32xf32> -> vector<64x32xf32>
    %71 = arith.mulf %70, %26 : vector<64x32xf32>
    %72 = vector.extract_strided_slice %71 {offsets = [0, 0], sizes = [16, 32], strides = [1, 1]} : vector<64x32xf32> to vector<16x32xf32>
    %73 = vector.extract_strided_slice %71 {offsets = [16, 0], sizes = [16, 32], strides = [1, 1]} : vector<64x32xf32> to vector<16x32xf32>
    %74 = arith.addf %72, %73 : vector<16x32xf32>
    %75 = vector.extract_strided_slice %71 {offsets = [32, 0], sizes = [16, 32], strides = [1, 1]} : vector<64x32xf32> to vector<16x32xf32>
    %76 = arith.addf %74, %75 : vector<16x32xf32>
    %77 = vector.extract_strided_slice %71 {offsets = [48, 0], sizes = [16, 32], strides = [1, 1]} : vector<64x32xf32> to vector<16x32xf32>
    %78 = arith.addf %76, %77 : vector<16x32xf32>
    %cst_18 = arith.constant dense<0.000000e+00> : vector<16x32xf32>
    %79 = tpu.matmul %78, %23, %cst_18 {dimension_numbers = #tpu.dot_dimension_numbers<[1], [0], [0], [1], [0, 0, 1, 1], [], []>} : vector<16x32xf32>, vector<32x32xf32>, vector<16x32xf32> -> vector<16x32xf32>
    %80 = vector.shape_cast %9 : vector<32xf32> to vector<1x32xf32>
    %81 = vector.broadcast %80 : vector<1x32xf32> to vector<16x32xf32>
    %82 = arith.addf %79, %81 : vector<16x32xf32>
    %83 = arith.addf %0, %82 : vector<16x32xf32>
    %cst_19 = arith.constant dense<0.000000e+00> : vector<16xf32>
    %84 = vector.multi_reduction <add>, %83, %cst_19 [1] : vector<16x32xf32> to vector<16xf32>
    %85 = vector.shape_cast %84 : vector<16xf32> to vector<16x1xf32>
    %86 = arith.mulf %83, %83 : vector<16x32xf32>
    %cst_20 = arith.constant dense<0.000000e+00> : vector<16xf32>
    %87 = vector.multi_reduction <add>, %86, %cst_20 [1] : vector<16x32xf32> to vector<16xf32>
    %88 = vector.shape_cast %87 : vector<16xf32> to vector<16x1xf32>
    %cst_21 = arith.constant 3.125000e-02 : f32
    %89 = vector.broadcast %cst_21 : f32 to vector<16x1xf32>
    %90 = arith.mulf %85, %89 : vector<16x1xf32>
    %cst_22 = arith.constant 3.125000e-02 : f32
    %91 = vector.broadcast %cst_22 : f32 to vector<16x1xf32>
    %92 = arith.mulf %88, %91 : vector<16x1xf32>
    %93 = arith.mulf %90, %90 : vector<16x1xf32>
    %94 = arith.subf %92, %93 : vector<16x1xf32>
    %cst_23 = arith.constant 9.99999974E-6 : f32
    %95 = vector.broadcast %cst_23 : f32 to vector<16x1xf32>
    %96 = arith.addf %94, %95 : vector<16x1xf32>
    %97 = math.rsqrt %96 : vector<16x1xf32>
    %98 = vector.shape_cast %11 : vector<32xf32> to vector<1x32xf32>
    %99 = vector.broadcast %97 : vector<16x1xf32> to vector<16x32xf32>
    %100 = vector.broadcast %98 : vector<1x32xf32> to vector<16x32xf32>
    %101 = arith.mulf %99, %100 : vector<16x32xf32>
    %102 = arith.mulf %83, %101 : vector<16x32xf32>
    %103 = vector.broadcast %90 : vector<16x1xf32> to vector<16x32xf32>
    %104 = arith.mulf %103, %101 : vector<16x32xf32>
    %105 = vector.shape_cast %13 : vector<32xf32> to vector<1x32xf32>
    %106 = vector.broadcast %105 : vector<1x32xf32> to vector<16x32xf32>
    %107 = arith.subf %106, %104 : vector<16x32xf32>
    %108 = arith.addf %102, %107 : vector<16x32xf32>
    %cst_24 = arith.constant dense<0.000000e+00> : vector<16x64xf32>
    %109 = tpu.matmul %108, %24, %cst_24 {dimension_numbers = #tpu.dot_dimension_numbers<[1], [0], [0], [1], [0, 0, 1, 1], [], []>} : vector<16x32xf32>, vector<32x64xf32>, vector<16x64xf32> -> vector<16x64xf32>
    %110 = vector.shape_cast %15 : vector<64xf32> to vector<1x64xf32>
    %111 = vector.broadcast %110 : vector<1x64xf32> to vector<16x64xf32>
    %112 = arith.addf %109, %111 : vector<16x64xf32>
    %cst_25 = arith.constant 5.000000e-01 : f32
    %113 = vector.broadcast %cst_25 : f32 to vector<16x64xf32>
    %114 = arith.mulf %113, %112 : vector<16x64xf32>
    %cst_26 = arith.constant 0.707106769 : f32
    %115 = vector.broadcast %cst_26 : f32 to vector<16x64xf32>
    %116 = arith.mulf %112, %115 : vector<16x64xf32>
    %117 = math.erf %116 : vector<16x64xf32>
    %cst_27 = arith.constant 1.000000e+00 : f32
    %118 = vector.broadcast %cst_27 : f32 to vector<16x64xf32>
    %119 = arith.addf %118, %117 : vector<16x64xf32>
    %120 = arith.mulf %114, %119 : vector<16x64xf32>
    %cst_28 = arith.constant dense<0.000000e+00> : vector<16xf32>
    %121 = vector.multi_reduction <add>, %120, %cst_28 [1] : vector<16x64xf32> to vector<16xf32>
    %122 = vector.shape_cast %121 : vector<16xf32> to vector<16x1xf32>
    %123 = arith.mulf %120, %120 : vector<16x64xf32>
    %cst_29 = arith.constant dense<0.000000e+00> : vector<16xf32>
    %124 = vector.multi_reduction <add>, %123, %cst_29 [1] : vector<16x64xf32> to vector<16xf32>
    %125 = vector.shape_cast %124 : vector<16xf32> to vector<16x1xf32>
    %cst_30 = arith.constant 1.562500e-02 : f32
    %126 = vector.broadcast %cst_30 : f32 to vector<16x1xf32>
    %127 = arith.mulf %122, %126 : vector<16x1xf32>
    %cst_31 = arith.constant 1.562500e-02 : f32
    %128 = vector.broadcast %cst_31 : f32 to vector<16x1xf32>
    %129 = arith.mulf %125, %128 : vector<16x1xf32>
    %130 = arith.mulf %127, %127 : vector<16x1xf32>
    %131 = arith.subf %129, %130 : vector<16x1xf32>
    %cst_32 = arith.constant 9.99999974E-6 : f32
    %132 = vector.broadcast %cst_32 : f32 to vector<16x1xf32>
    %133 = arith.addf %131, %132 : vector<16x1xf32>
    %134 = math.rsqrt %133 : vector<16x1xf32>
    %135 = vector.shape_cast %17 : vector<64xf32> to vector<1x64xf32>
    %136 = vector.broadcast %134 : vector<16x1xf32> to vector<16x64xf32>
    %137 = vector.broadcast %135 : vector<1x64xf32> to vector<16x64xf32>
    %138 = arith.mulf %136, %137 : vector<16x64xf32>
    %139 = arith.mulf %120, %138 : vector<16x64xf32>
    %140 = vector.broadcast %127 : vector<16x1xf32> to vector<16x64xf32>
    %141 = arith.mulf %140, %138 : vector<16x64xf32>
    %142 = vector.shape_cast %19 : vector<64xf32> to vector<1x64xf32>
    %143 = vector.broadcast %142 : vector<1x64xf32> to vector<16x64xf32>
    %144 = arith.subf %143, %141 : vector<16x64xf32>
    %145 = arith.addf %139, %144 : vector<16x64xf32>
    %cst_33 = arith.constant dense<0.000000e+00> : vector<16x32xf32>
    %146 = tpu.matmul %145, %25, %cst_33 {dimension_numbers = #tpu.dot_dimension_numbers<[1], [0], [0], [1], [0, 0, 1, 1], [], []>} : vector<16x64xf32>, vector<64x32xf32>, vector<16x32xf32> -> vector<16x32xf32>
    %147 = vector.shape_cast %21 : vector<32xf32> to vector<1x32xf32>
    %148 = vector.broadcast %147 : vector<1x32xf32> to vector<16x32xf32>
    %149 = arith.addf %146, %148 : vector<16x32xf32>
    %150 = arith.addf %83, %149 : vector<16x32xf32>
    %c0_34 = arith.constant 0 : index
    %c0_35 = arith.constant 0 : index
    %151 = vector.load %arg3[%c0_34, %c0_35] : memref<16x32xf32, #tpu.memory_space<vmem>>, vector<16x32xf32>
    tpu.vector_store %arg3[%c0_34, %c0_35], %150 {strides = array<i32>} : memref<16x32xf32, #tpu.memory_space<vmem>>, vector<16x32xf32>,
    return
  }
}

</mosaic_0001>

<llo_original>
// kernel: tpu_custom_call.1
$region0: #{tpu_custom_call.1}
  #allocation0 [shape = 'u32[]', space=smem, size = 0x4, offset = 0x4, fixed_abs, tag = 'smem constant byte address 0x4 - core index']
  #allocation1 [shape = 'u32[144,128]{1,0:T(1,128)}', space=vmem, size = 0x12000, scoped, tag = 'internal scratch']
  %s0 = inlined_call_operand.hbm [shape: f32[16,32], index: 0, kind: input, shape index: {}]
  %s1 = inlined_call_operand.hbm [shape: f32[64,272], index: 1, kind: input, shape index: {}]
  %s2 = inlined_call_operand.hbm [shape: f32[10,128], index: 2, kind: input, shape index: {}]
  %s3 = inlined_call_operand.hbm [shape: f32[16,32], index: 3, kind: output, shape index: {}]
  %s4 = sld [smem:[#allocation0]]
  $region34: #{tpu_custom_call.1} parent=0
    _
  %s6 = ssub.s32 1, %s4
  %s7 = scalar_select 0, %s6, %s4
  $region1: #{tpu_custom_call.1} parent=0
    #allocation2 [shape = 'u8[8192]{0}', space=vmem, size = 0x2000, scoped, tag = 'input window, operand 0, single buffered']
    #allocation3 [shape = 's32[1]{0}', space=sflag, size = 0x4, scoped, tag = 'scoped memory for tpu_custom_call.1']
    #allocation4 [shape = 's32[1]{0}', space=sflag, size = 0x4, scoped, tag = 'scoped memory for tpu_custom_call.1']
    #allocation5 [shape = 'u8[98304]{0}', space=vmem, size = 0x18000, scoped, tag = 'input window, operand 1, single buffered']
    #allocation6 [shape = 's32[1]{0}', space=sflag, size = 0x4, scoped, tag = 'scoped memory for tpu_custom_call.1']
    #allocation7 [shape = 'u8[8192]{0}', space=vmem, size = 0x2000, scoped, tag = 'input window, operand 2, single buffered']
    #allocation8 [shape = 'u8[8192]{0}', space=vmem, size = 0x2000, scoped, tag = 'output window, operand 0, single buffered']
    %8 = vsyncpa [#allocation3], 0
    %9 = vsyncpa [#allocation6], 0
    %10 = vsyncpa [#allocation4], 0
    // Predicated region
    $region2: #{tpu_custom_call.1} parent=1 // pred_check
      _
    $region3: #{tpu_custom_call.1} parent=1 // pred_check_branch
      %12 = sbr.rel (0) target = $region5
    $region4: #{tpu_custom_call.1} parent=1 // pred_region
      %s14 = ssub.s32 256, 256
      %15 = vsyncadd [#allocation3], %s14
      %s16 = sshll.u32 [#allocation2], 4
      %s17 = int_to_ptr.vmem [resolvable:$true] %s16
      %22 = dma.hbm_to_vmem [thread:$0]  %s0, 256, %s17, [#allocation3], 128, 128, 8
    $region5: #{tpu_custom_call.1} parent=1 // pred_fallthru
      _
    // Predicated region
    $region6: #{tpu_custom_call.1} parent=1 // pred_check
      _
    $region7: #{tpu_custom_call.1} parent=1 // pred_check_branch
      %24 = sbr.rel (0) target = $region9
    $region8: #{tpu_custom_call.1} parent=1 // pred_region
      %s26 = ssub.s32 3072, 3072
      %27 = vsyncadd [#allocation6], %s26
      %s28 = sshll.u32 [#allocation5], 4
      %s29 = int_to_ptr.vmem [resolvable:$true] %s28
      %34 = dma.hbm_to_vmem [thread:$0]  %s1, 3072, %s29, [#allocation6], 384, 384, 24
    $region9: #{tpu_custom_call.1} parent=1 // pred_fallthru
      _
    // Predicated region
    $region10: #{tpu_custom_call.1} parent=1 // pred_check
      _
    $region11: #{tpu_custom_call.1} parent=1 // pred_check_branch
      %36 = sbr.rel (0) target = $region13
    $region12: #{tpu_custom_call.1} parent=1 // pred_region
      %s38 = ssub.s32 256, 256
      %39 = vsyncadd [#allocation6], %s38
      %s40 = sshll.u32 [#allocation7], 4
      %s41 = int_to_ptr.vmem [resolvable:$true] %s40
      %46 = dma.hbm_to_vmem [thread:$0]  %s2, 256, %s41, [#allocation6], 128, 128, 8
    $region13: #{tpu_custom_call.1} parent=1 // pred_fallthru
      _
    // Predicated region
    $region14: #{tpu_custom_call.1} parent=1 // pred_check
      _
    $region15: #{tpu_custom_call.1} parent=1 // pred_check_branch
      %48 = sbr.rel (0) target = $region17
    $region16: #{tpu_custom_call.1} parent=1 // pred_region
      %49 = dma.done [#allocation3], 256
    $region17: #{tpu_custom_call.1} parent=1 // pred_fallthru
      _
    // Predicated region
    $region18: #{tpu_custom_call.1} parent=1 // pred_check
      _
    $region19: #{tpu_custom_call.1} parent=1 // pred_check_branch
      %51 = sbr.rel (0) target = $region21
    $region20: #{tpu_custom_call.1} parent=1 // pred_region
      %52 = dma.done [#allocation6], 3072
    $region21: #{tpu_custom_call.1} parent=1 // pred_fallthru
      _
    // Predicated region
    $region22: #{tpu_custom_call.1} parent=1 // pred_check
      _
    $region23: #{tpu_custom_call.1} parent=1 // pred_check_branch
      %54 = sbr.rel (0) target = $region25
    $region24: #{tpu_custom_call.1} parent=1 // pred_region
      %55 = dma.done [#allocation6], 256
    $region25: #{tpu_custom_call.1} parent=1 // pred_fallthru
      _
    %v56 = vld [vmem:[#allocation2] sm:$0xff]
    %v57 = vld [vmem:[#allocation2 + $0x8] sm:$0xff]
    %v58 = vld [vmem:[#allocation7] sm:$0xff]
    %v59 = vld [vmem:[#allocation7 + $0x8] sm:$0x3]
    %v60 = vld [vmem:[#allocation5] sm:$0xff]
    %v61 = vld [vmem:[#allocation5 + $0x18] sm:$0xff]
    %v62 = vld [vmem:[#allocation5 + $0x30] sm:$0xff]
    %v63 = vld [vmem:[#allocation5 + $0x48] sm:$0xff]
    %v64 = vld [vmem:[#allocation5 + $0x8] sm:$0xff]
    %v65 = vld [vmem:[#allocation5 + $0x20] sm:$0xff]
    %v66 = vld [vmem:[#allocation5 + $0x38] sm:$0xff]
    %v67 = vld [vmem:[#allocation5 + $0x50] sm:$0xff]
    %v68 = vld [vmem:[#allocation5 + $0x68] sm:$0xff]
    %v69 = vld [vmem:[#allocation5 + $0x80] sm:$0xff]
    %v70 = vld [vmem:[#allocation5 + $0x98] sm:$0xff]
    %v71 = vld [vmem:[#allocation5 + $0xb0] sm:$0xff]
    %v72 = vld [vmem:[#allocation5 + $0x10] sm:$0xff]
    %v73 = vld [vmem:[#allocation5 + $0x28] sm:$0xff]
    %v74 = vld [vmem:[#allocation5 + $0x40] sm:$0xff]
    %v75 = vld [vmem:[#allocation5 + $0x58] sm:$0xff]
    %v76 = vld [vmem:[#allocation5 + $0x70] sm:$0xff]
    %v77 = vld [vmem:[#allocation5 + $0x88] sm:$0xff]
    %v78 = vld [vmem:[#allocation5 + $0xa0] sm:$0xff]
    %v79 = vld [vmem:[#allocation5 + $0xb8] sm:$0xff]
    %vm80 = vcmask 261120
    %v81 = vsel %vm80, %v56, 0.0
    %82 = vadd.xlane.f32.xlu0 %v81
    %v83 = vpop.xlane.xlu0 %82
    %v84 = vsel %vm80, %v57, 0.0
    %85 = vadd.xlane.f32.xlu0 %v84
    %v86 = vpop.xlane.xlu0 %85
    %v87 = vmul.f32 %v56, %v56
    %v88 = vmul.f32 %v57, %v57
    %v89 = vsel %vm80, %v87, 0.0
    %90 = vadd.xlane.f32.xlu0 %v89
    %v91 = vpop.xlane.xlu0 %90
    %v92 = vsel %vm80, %v88, 0.0
    %93 = vadd.xlane.f32.xlu0 %v92
    %v94 = vpop.xlane.xlu0 %93
    %v95 = vmul.f32 %v83, 0.03125
    %v96 = vmul.f32 %v86, 0.03125
    %v97 = vmul.f32 %v91, 0.03125
    %v98 = vmul.f32 %v94, 0.03125
    %v99 = vmul.f32 %v95, %v95
    %v100 = vmul.f32 %v96, %v96
    %v101 = vsub.f32 %v97, %v99
    %v102 = vsub.f32 %v98, %v100
    %v103 = vadd.f32 %v101, 1e-05
    %v104 = vadd.f32 %v102, 1e-05
    %v105 = vrsqrt.pop %v103
    %v106 = vrsqrt.pop %v104
    %v107 = vlaneseq
    %v108 = vshrl.u32 %v107, 7
    %v109 = vsub.s32 0, %v108
    %v110 = vrot.slane %v58, %v109
    %v111 = vmul.f32 %v105, %v110
    %v112 = vmul.f32 %v106, %v110
    %v113 = vmul.f32 %v56, %v111
    %v114 = vmul.f32 %v57, %v112
    %v115 = vmul.f32 %v95, %v111
    %v116 = vmul.f32 %v96, %v112
    %v117 = vlaneseq
    %v118 = vshrl.u32 %v117, 7
    %v119 = vsub.s32 1, %v118
    %v120 = vrot.slane %v58, %v119
    %v121 = vsub.f32 %v120, %v115
    %v122 = vsub.f32 %v120, %v116
    %v123 = vadd.f32 %v113, %v121
    %v124 = vadd.f32 %v114, %v122
    %v125 = vlaneseq
    %v126 = vshrl.u32 %v125, 7
    %v127 = vsub.s32 2, %v126
    %v128 = vrot.slane %v58, %v127
    %v130 = vsel %vm80, %v123, 0
    %v133 = vsel %vm80, %v124, 0
    %135 = vmatprep.subr.mxu0 0.0
    %136 = vmatpush1.msra.mxu0 0.0
    %137 = vmatprep.subr.mxu0 0.0
    %138 = vmatpush1.msra.mxu0 0.0
    %139 = vmatprep.subr.mxu0 0.0
    %140 = vmatpush1.msra.mxu0 0.0
    %141 = vmatprep.subr.mxu0 0.0
    %142 = vmatpush1.msra.mxu0 0.0
    %143 = vmatprep.subr.mxu0 0.0
    %144 = vmatpush1.msra.mxu0 0.0
    %145 = vmatprep.subr.mxu0 0.0
    %146 = vmatpush1.msra.mxu0 0.0
    %147 = vmatprep.subr.mxu0 0.0
    %148 = vmatpush1.msra.mxu0 0.0
    %149 = vmatprep.subr.mxu0 0.0
    %150 = vmatpush1.msra.mxu0 0.0
    %151 = vmatprep.subr.mxu0 0.0
    %152 = vmatpush1.msra.mxu0 0.0
    %153 = vmatprep.subr.mxu0 0.0
    %154 = vmatpush1.msra.mxu0 0.0
    %155 = vmatprep.subr.mxu0 0.0
    %156 = vmatpush1.msra.mxu0 0.0
    %157 = vmatprep.subr.mxu0 0.0
    %158 = vmatpush1.msra.mxu0 0.0
    %159 = vmatprep.subr.mxu0 0.0
    %160 = vmatpush1.msra.mxu0 %v63
    %161 = vmatprep.subr.mxu0 0.0
    %162 = vmatpush1.msra.mxu0 %v62
    %163 = vmatprep.subr.mxu0 0.0
    %164 = vmatpush1.msra.mxu0 %v61
    %165 = vmatprep.subr.mxu0 0.0
    %166 = vmatpush1.msra.mxu0 %v60
    %167 = vmatprep.subr.mxu0 0.0
    %168 = vmatpush2.msra.mxu0 0.0
    %169 = vmatprep.subr.mxu0 0.0
    %170 = vmatpush2.msra.mxu0 0.0
    %171 = vmatprep.subr.mxu0 0.0
    %172 = vmatpush2.msra.mxu0 0.0
    %173 = vmatprep.subr.mxu0 0.0
    %174 = vmatpush2.msra.mxu0 0.0
    %175 = vmatprep.subr.mxu0 0.0
    %176 = vmatpush2.msra.mxu0 0.0
    %177 = vmatprep.subr.mxu0 0.0
    %178 = vmatpush2.msra.mxu0 0.0
    %179 = vmatprep.subr.mxu0 0.0
    %180 = vmatpush2.msra.mxu0 0.0
    %181 = vmatprep.subr.mxu0 0.0
    %182 = vmatpush2.msra.mxu0 0.0
    %183 = vmatprep.subr.mxu0 0.0
    %184 = vmatpush2.msra.mxu0 0.0
    %185 = vmatprep.subr.mxu0 0.0
    %186 = vmatpush2.msra.mxu0 0.0
    %187 = vmatprep.subr.mxu0 0.0
    %188 = vmatpush2.msra.mxu0 0.0
    %189 = vmatprep.subr.mxu0 0.0
    %190 = vmatpush2.msra.mxu0 0.0
    %191 = vmatprep.subr.mxu0 0.0
    %192 = vmatpush2.msra.mxu0 0.0
    %193 = vmatprep.subr.mxu0 0.0
    %194 = vmatpush2.msra.mxu0 0.0
    %195 = vmatprep.subr.mxu0 0.0
    %196 = vmatpush2.msra.mxu0 0.0
    %197 = vmatprep.subr.mxu0 0.0
    %198 = vmatpush2.msra.mxu0 0.0
    %199 = vmatprep.mubr.f32.mxu0 0.0
    %200 = vmatmul.mubr.f32.gmra.mxu0 %v130
    %v201 = vpop.f32.mrf.mxu0
    %v202 = vadd.f32 %v128, %v201
    %v203 = vpop.f32.mrf.mxu0
    %204 = vmatprep.mubr.f32.mxu0 0.0
    %205 = vmatmul.mubr.f32.gmra.mxu0 %v133
    %v206 = vpop.f32.mrf.mxu0
    %v207 = vadd.f32 %v128, %v206
    %v208 = vpop.f32.mrf.mxu0
    %209 = vdwg.mxu0
    %218 = vrot.lane.b32.xlu0 %v64, 32
    %v219 = vpop.permute.xlu0 %218
    %220 = vrot.lane.b32.xlu0 %v65, 32
    %v221 = vpop.permute.xlu0 %220
    %222 = vrot.lane.b32.xlu0 %v66, 32
    %v223 = vpop.permute.xlu0 %222
    %224 = vrot.lane.b32.xlu0 %v67, 32
    %v225 = vpop.permute.xlu0 %224
    %226 = vrot.lane.b32.xlu0 %v68, 32
    %v227 = vpop.permute.xlu0 %226
    %228 = vrot.lane.b32.xlu0 %v69, 32
    %v229 = vpop.permute.xlu0 %228
    %230 = vrot.lane.b32.xlu0 %v70, 32
    %v231 = vpop.permute.xlu0 %230
    %232 = vrot.lane.b32.xlu0 %v71, 32
    %v233 = vpop.permute.xlu0 %232
    %v242 = vmul.f32 %v202, %v219
    %v243 = vmul.f32 %v207, %v221
    %v244 = vmul.f32 %v202, %v223
    %v245 = vmul.f32 %v207, %v225
    %v246 = vmul.f32 %v202, %v227
    %v247 = vmul.f32 %v207, %v229
    %v248 = vmul.f32 %v202, %v231
    %v249 = vmul.f32 %v207, %v233
    %252 = vrot.lane.b32.xlu0 %v202, 96
    %v253 = vpop.permute.xlu0 %252
    %254 = vrot.lane.b32.xlu0 %v207, 96
    %v255 = vpop.permute.xlu0 %254
    %v257 = vsel %vm80, %v242, 0
    %v260 = vsel %vm80, %v243, 0
    %v263 = vsel %vm80, %v244, 0
    %v266 = vsel %vm80, %v245, 0
    %v269 = vsel %vm80, %v246, 0
    %v272 = vsel %vm80, %v247, 0
    %v275 = vsel %vm80, %v248, 0
    %v278 = vsel %vm80, %v249, 0
    %v280 = vsel %vm80, %v253, 0
    %v282 = vsel %vm80, %v255, 0
    %284 = vmatprep.subr.mxu0 0.0
    %285 = vmatpush1.xpose.msra.mxu0 0.0
    %286 = vmatprep.subr.mxu0 0.0
    %287 = vmatpush1.xpose.msra.mxu0 0.0
    %288 = vmatprep.subr.mxu0 0.0
    %289 = vmatpush1.xpose.msra.mxu0 0.0
    %290 = vmatprep.subr.mxu0 0.0
    %291 = vmatpush1.xpose.msra.mxu0 0.0
    %292 = vmatprep.subr.mxu0 0.0
    %293 = vmatpush1.xpose.msra.mxu0 0.0
    %294 = vmatprep.subr.mxu0 0.0
    %295 = vmatpush1.xpose.msra.mxu0 0.0
    %296 = vmatprep.subr.mxu0 0.0
    %297 = vmatpush1.xpose.msra.mxu0 0.0
    %298 = vmatprep.subr.mxu0 0.0
    %299 = vmatpush1.xpose.msra.mxu0 0.0
    %300 = vmatprep.subr.mxu0 0.0
    %301 = vmatpush1.xpose.msra.mxu0 0.0
    %302 = vmatprep.subr.mxu0 0.0
    %303 = vmatpush1.xpose.msra.mxu0 0.0
    %304 = vmatprep.subr.mxu0 0.0
    %305 = vmatpush1.xpose.msra.mxu0 0.0
    %306 = vmatprep.subr.mxu0 0.0
    %307 = vmatpush1.xpose.msra.mxu0 0.0
    %308 = vmatprep.subr.mxu0 0.0
    %309 = vmatpush1.xpose.msra.mxu0 0.0
    %310 = vmatprep.subr.mxu0 0.0
    %311 = vmatpush1.xpose.msra.mxu0 0.0
    %312 = vmatprep.subr.mxu0 0.0
    %313 = vmatpush1.xpose.msra.mxu0 %v282
    %314 = vmatprep.subr.mxu0 0.0
    %315 = vmatpush1.xpose.msra.mxu0 %v280
    %316 = vmatprep.subr.mxu0 0.0
    %317 = vmatpush2.xpose.msra.mxu0 0.0
    %318 = vmatprep.subr.mxu0 0.0
    %319 = vmatpush2.xpose.msra.mxu0 0.0
    %320 = vmatprep.subr.mxu0 0.0
    %321 = vmatpush2.xpose.msra.mxu0 0.0
    %322 = vmatprep.subr.mxu0 0.0
    %323 = vmatpush2.xpose.msra.mxu0 0.0
    %324 = vmatprep.subr.mxu0 0.0
    %325 = vmatpush2.xpose.msra.mxu0 0.0
    %326 = vmatprep.subr.mxu0 0.0
    %327 = vmatpush2.xpose.msra.mxu0 0.0
    %328 = vmatprep.subr.mxu0 0.0
    %329 = vmatpush2.xpose.msra.mxu0 0.0
    %330 = vmatprep.subr.mxu0 0.0
    %331 = vmatpush2.xpose.msra.mxu0 0.0
    %332 = vmatprep.subr.mxu0 0.0
    %333 = vmatpush2.xpose.msra.mxu0 0.0
    %334 = vmatprep.subr.mxu0 0.0
    %335 = vmatpush2.xpose.msra.mxu0 0.0
    %336 = vmatprep.subr.mxu0 0.0
    %337 = vmatpush2.xpose.msra.mxu0 0.0
    %338 = vmatprep.subr.mxu0 0.0
    %339 = vmatpush2.xpose.msra.mxu0 0.0
    %340 = vmatprep.subr.mxu0 0.0
    %341 = vmatpush2.xpose.msra.mxu0 0.0
    %342 = vmatprep.subr.mxu0 0.0
    %343 = vmatpush2.xpose.msra.mxu0 0.0
    %344 = vmatprep.subr.mxu0 0.0
    %345 = vmatpush2.xpose.msra.mxu0 0.0
    %346 = vmatprep.subr.mxu0 0.0
    %347 = vmatpush2.xpose.msra.mxu0 0.0
    %348 = vmatprep.mubr.f32.mxu0 0.0
    %349 = vmatmul.mubr.f32.gmra.mxu0 %v257
    %v350 = vpop.f32.mrf.mxu0
    %v351 = vadd.f32 %v72, %v350
    %v352 = vpop.f32.mrf.mxu0
    %353 = vmatprep.mubr.f32.mxu0 0.0
    %354 = vmatmul.mubr.f32.gmra.mxu0 %v260
    %v355 = vpop.f32.mrf.mxu0
    %v356 = vadd.f32 %v73, %v355
    %v357 = vpop.f32.mrf.mxu0
    %358 = vmatprep.mubr.f32.mxu0 0.0
    %359 = vmatmul.mubr.f32.gmra.mxu0 %v263
    %v360 = vpop.f32.mrf.mxu0
    %v361 = vadd.f32 %v74, %v360
    %v362 = vpop.f32.mrf.mxu0
    %363 = vmatprep.mubr.f32.mxu0 0.0
    %364 = vmatmul.mubr.f32.gmra.mxu0 %v266
    %v365 = vpop.f32.mrf.mxu0
    %v366 = vadd.f32 %v75, %v365
    %v367 = vpop.f32.mrf.mxu0
    %368 = vmatprep.mubr.f32.mxu0 0.0
    %369 = vmatmul.mubr.f32.gmra.mxu0 %v269
    %v370 = vpop.f32.mrf.mxu0
    %v371 = vadd.f32 %v76, %v370
    %v372 = vpop.f32.mrf.mxu0
    %373 = vmatprep.mubr.f32.mxu0 0.0
    %374 = vmatmul.mubr.f32.gmra.mxu0 %v272
    %v375 = vpop.f32.mrf.mxu0
    %v376 = vadd.f32 %v77, %v375
    %v377 = vpop.f32.mrf.mxu0
    %378 = vmatprep.mubr.f32.mxu0 0.0
    %379 = vmatmul.mubr.f32.gmra.mxu0 %v275
    %v380 = vpop.f32.mrf.mxu0
    %v381 = vadd.f32 %v78, %v380
    %v382 = vpop.f32.mrf.mxu0
    %383 = vmatprep.mubr.f32.mxu0 0.0
    %384 = vmatmul.mubr.f32.gmra.mxu0 %v278
    %v385 = vpop.f32.mrf.mxu0
    %v386 = vadd.f32 %v79, %v385
    %v387 = vpop.f32.mrf.mxu0
    %388 = vdwg.mxu0
    %v389 = vmul.f32 %v351, 1.442695
    %v390 = vpow.pop %v389
    %v391 = vmul.f32 %v356, 1.442695
    %v392 = vpow.pop %v391
    %v393 = vmul.f32 %v361, 1.442695
    %v394 = vpow.pop %v393
    %v395 = vmul.f32 %v366, 1.442695
    %v396 = vpow.pop %v395
    %v397 = vmul.f32 %v371, 1.442695
    %v398 = vpow.pop %v397
    %v399 = vmul.f32 %v376, 1.442695
    %v400 = vpow.pop %v399
    %v401 = vmul.f32 %v381, 1.442695
    %v402 = vpow.pop %v401
    %v403 = vmul.f32 %v386, 1.442695
    %v404 = vpow.pop %v403
    %vm405 = vcmask 130048
    %v406 = vsel %vm405, %v390, 0.0
    %407 = vadd.xlane.f32.xlu0 %v406
    %v408 = vpop.xlane.xlu0 %407
    %v409 = vsel %vm405, %v392, 0.0
    %410 = vadd.xlane.f32.xlu0 %v409
    %v411 = vpop.xlane.xlu0 %410
    %v412 = vsel %vm405, %v394, 0.0
    %413 = vadd.xlane.f32.xlu0 %v412
    %v414 = vpop.xlane.xlu0 %413
    %v415 = vsel %vm405, %v396, 0.0
    %416 = vadd.xlane.f32.xlu0 %v415
    %v417 = vpop.xlane.xlu0 %416
    %v418 = vsel %vm405, %v398, 0.0
    %419 = vadd.xlane.f32.xlu0 %v418
    %v420 = vpop.xlane.xlu0 %419
    %v421 = vsel %vm405, %v400, 0.0
    %422 = vadd.xlane.f32.xlu0 %v421
    %v423 = vpop.xlane.xlu0 %422
    %v424 = vsel %vm405, %v402, 0.0
    %425 = vadd.xlane.f32.xlu0 %v424
    %v426 = vpop.xlane.xlu0 %425
    %v427 = vsel %vm405, %v404, 0.0
    %428 = vadd.xlane.f32.xlu0 %v427
    %v429 = vpop.xlane.xlu0 %428
    %v430 = vrcp.pop %v408
    %v431 = vrcp.pop %v411
    %v432 = vrcp.pop %v414
    %v433 = vrcp.pop %v417
    %v434 = vrcp.pop %v420
    %v435 = vrcp.pop %v423
    %v436 = vrcp.pop %v426
    %v437 = vrcp.pop %v429
    %v438 = vmul.f32 %v390, %v430
    %v439 = vmul.f32 %v392, %v431
    %v440 = vmul.f32 %v394, %v432
    %v441 = vmul.f32 %v396, %v433
    %v442 = vmul.f32 %v398, %v434
    %v443 = vmul.f32 %v400, %v435
    %v444 = vmul.f32 %v402, %v436
    %v445 = vmul.f32 %v404, %v437
    %446 = vrot.lane.b32.xlu0 %v202, 64
    %v447 = vpop.permute.xlu0 %446
    %448 = vrot.lane.b32.xlu0 %v207, 64
    %v449 = vpop.permute.xlu0 %448
    %v453 = vsel %vm405, %v438, 0
    %v456 = vsel %vm405, %v439, 0
    %v459 = vsel %vm405, %v440, 0
    %v462 = vsel %vm405, %v441, 0
    %v465 = vsel %vm405, %v442, 0
    %v468 = vsel %vm405, %v443, 0
    %v471 = vsel %vm405, %v444, 0
    %v474 = vsel %vm405, %v445, 0
    %476 = vmatprep.subr.mxu0 0.0
    %477 = vmatpush1.msra.mxu0 0.0
    %478 = vmatprep.subr.mxu0 0.0
    %479 = vmatpush1.msra.mxu0 0.0
    %480 = vmatprep.subr.mxu0 0.0
    %481 = vmatpush1.msra.mxu0 0.0
    %482 = vmatprep.subr.mxu0 0.0
    %483 = vmatpush1.msra.mxu0 0.0
    %484 = vmatprep.subr.mxu0 0.0
    %485 = vmatpush1.msra.mxu0 0.0
    %486 = vmatprep.subr.mxu0 0.0
    %487 = vmatpush1.msra.mxu0 0.0
    %488 = vmatprep.subr.mxu0 0.0
    %489 = vmatpush1.msra.mxu0 0.0
    %490 = vmatprep.subr.mxu0 0.0
    %491 = vmatpush1.msra.mxu0 0.0
    %492 = vmatprep.subr.mxu0 0.0
    %493 = vmatpush1.msra.mxu0 0.0
    %494 = vmatprep.subr.mxu0 0.0
    %495 = vmatpush1.msra.mxu0 0.0
    %496 = vmatprep.subr.mxu0 0.0
    %497 = vmatpush1.msra.mxu0 0.0
    %498 = vmatprep.subr.mxu0 0.0
    %499 = vmatpush1.msra.mxu0 0.0
    %500 = vmatprep.subr.mxu0 0.0
    %501 = vmatpush1.msra.mxu0 0.0
    %502 = vmatprep.subr.mxu0 0.0
    %503 = vmatpush1.msra.mxu0 0.0
    %504 = vmatprep.subr.mxu0 0.0
    %505 = vmatpush1.msra.mxu0 %v449
    %506 = vmatprep.subr.mxu0 0.0
    %507 = vmatpush1.msra.mxu0 %v447
    %508 = vmatprep.subr.mxu0 0.0
    %509 = vmatpush2.msra.mxu0 0.0
    %510 = vmatprep.subr.mxu0 0.0
    %511 = vmatpush2.msra.mxu0 0.0
    %512 = vmatprep.subr.mxu0 0.0
    %513 = vmatpush2.msra.mxu0 0.0
    %514 = vmatprep.subr.mxu0 0.0
    %515 = vmatpush2.msra.mxu0 0.0
    %516 = vmatprep.subr.mxu0 0.0
    %517 = vmatpush2.msra.mxu0 0.0
    %518 = vmatprep.subr.mxu0 0.0
    %519 = vmatpush2.msra.mxu0 0.0
    %520 = vmatprep.subr.mxu0 0.0
    %521 = vmatpush2.msra.mxu0 0.0
    %522 = vmatprep.subr.mxu0 0.0
    %523 = vmatpush2.msra.mxu0 0.0
    %524 = vmatprep.subr.mxu0 0.0
    %525 = vmatpush2.msra.mxu0 0.0
    %526 = vmatprep.subr.mxu0 0.0
    %527 = vmatpush2.msra.mxu0 0.0
    %528 = vmatprep.subr.mxu0 0.0
    %529 = vmatpush2.msra.mxu0 0.0
    %530 = vmatprep.subr.mxu0 0.0
    %531 = vmatpush2.msra.mxu0 0.0
    %532 = vmatprep.subr.mxu0 0.0
    %533 = vmatpush2.msra.mxu0 0.0
    %534 = vmatprep.subr.mxu0 0.0
    %535 = vmatpush2.msra.mxu0 0.0
    %536 = vmatprep.subr.mxu0 0.0
    %537 = vmatpush2.msra.mxu0 0.0
    %538 = vmatprep.subr.mxu0 0.0
    %539 = vmatpush2.msra.mxu0 0.0
    %540 = vmatprep.mubr.f32.mxu0 0.0
    %541 = vmatmul.mubr.f32.gmra.mxu0 %v453
    %v542 = vpop.f32.mrf.mxu0
    %v543 = vadd.f32 0.0, %v542
    %v544 = vpop.f32.mrf.mxu0
    %545 = vmatprep.mubr.f32.mxu0 0.0
    %546 = vmatmul.mubr.f32.gmra.mxu0 %v456
    %v547 = vpop.f32.mrf.mxu0
    %v548 = vadd.f32 0.0, %v547
    %v549 = vpop.f32.mrf.mxu0
    %550 = vmatprep.mubr.f32.mxu0 0.0
    %551 = vmatmul.mubr.f32.gmra.mxu0 %v459
    %v552 = vpop.f32.mrf.mxu0
    %v553 = vadd.f32 0.0, %v552
    %v554 = vpop.f32.mrf.mxu0
    %555 = vmatprep.mubr.f32.mxu0 0.0
    %556 = vmatmul.mubr.f32.gmra.mxu0 %v462
    %v557 = vpop.f32.mrf.mxu0
    %v558 = vadd.f32 0.0, %v557
    %v559 = vpop.f32.mrf.mxu0
    %560 = vmatprep.mubr.f32.mxu0 0.0
    %561 = vmatmul.mubr.f32.gmra.mxu0 %v465
    %v562 = vpop.f32.mrf.mxu0
    %v563 = vadd.f32 0.0, %v562
    %v564 = vpop.f32.mrf.mxu0
    %565 = vmatprep.mubr.f32.mxu0 0.0
    %566 = vmatmul.mubr.f32.gmra.mxu0 %v468
    %v567 = vpop.f32.mrf.mxu0
    %v568 = vadd.f32 0.0, %v567
    %v569 = vpop.f32.mrf.mxu0
    %570 = vmatprep.mubr.f32.mxu0 0.0
    %571 = vmatmul.mubr.f32.gmra.mxu0 %v471
    %v572 = vpop.f32.mrf.mxu0
    %v573 = vadd.f32 0.0, %v572
    %v574 = vpop.f32.mrf.mxu0
    %575 = vmatprep.mubr.f32.mxu0 0.0
    %576 = vmatmul.mubr.f32.gmra.mxu0 %v474
    %v577 = vpop.f32.mrf.mxu0
    %v578 = vadd.f32 0.0, %v577
    %v579 = vpop.f32.mrf.mxu0
    %580 = vdwg.mxu0
    %v581 = vmul.f32 %v543, %v219
    %v582 = vmul.f32 %v548, %v221
    %v583 = vmul.f32 %v553, %v223
    %v584 = vmul.f32 %v558, %v225
    %v585 = vmul.f32 %v563, %v227
    %v586 = vmul.f32 %v568, %v229
    %v587 = vmul.f32 %v573, %v231
    %v588 = vmul.f32 %v578, %v233
    %v589 = vadd.f32 %v581, %v583
    %v590 = vadd.f32 %v582, %v584
    %v591 = vadd.f32 %v589, %v585
    %v592 = vadd.f32 %v590, %v586
    %v593 = vadd.f32 %v591, %v587
    %v594 = vadd.f32 %v592, %v588
    %v595 = vlaneseq
    %v596 = vshrl.u32 %v595, 7
    %v597 = vsub.s32 3, %v596
    %v598 = vrot.slane %v58, %v597
    %603 = vrot.lane.b32.xlu0 %v60, 32
    %v604 = vpop.permute.xlu0 %603
    %605 = vrot.lane.b32.xlu0 %v61, 32
    %v606 = vpop.permute.xlu0 %605
    %607 = vrot.lane.b32.xlu0 %v62, 32
    %v608 = vpop.permute.xlu0 %607
    %609 = vrot.lane.b32.xlu0 %v63, 32
    %v610 = vpop.permute.xlu0 %609
    %v616 = vsel %vm80, %v593, 0
    %v619 = vsel %vm80, %v594, 0
    %621 = vmatprep.subr.mxu0 0.0
    %622 = vmatpush1.msra.mxu0 0.0
    %623 = vmatprep.subr.mxu0 0.0
    %624 = vmatpush1.msra.mxu0 0.0
    %625 = vmatprep.subr.mxu0 0.0
    %626 = vmatpush1.msra.mxu0 0.0
    %627 = vmatprep.subr.mxu0 0.0
    %628 = vmatpush1.msra.mxu0 0.0
    %629 = vmatprep.subr.mxu0 0.0
    %630 = vmatpush1.msra.mxu0 0.0
    %631 = vmatprep.subr.mxu0 0.0
    %632 = vmatpush1.msra.mxu0 0.0
    %633 = vmatprep.subr.mxu0 0.0
    %634 = vmatpush1.msra.mxu0 0.0
    %635 = vmatprep.subr.mxu0 0.0
    %636 = vmatpush1.msra.mxu0 0.0
    %637 = vmatprep.subr.mxu0 0.0
    %638 = vmatpush1.msra.mxu0 0.0
    %639 = vmatprep.subr.mxu0 0.0
    %640 = vmatpush1.msra.mxu0 0.0
    %641 = vmatprep.subr.mxu0 0.0
    %642 = vmatpush1.msra.mxu0 0.0
    %643 = vmatprep.subr.mxu0 0.0
    %644 = vmatpush1.msra.mxu0 0.0
    %645 = vmatprep.subr.mxu0 0.0
    %646 = vmatpush1.msra.mxu0 %v610
    %647 = vmatprep.subr.mxu0 0.0
    %648 = vmatpush1.msra.mxu0 %v608
    %649 = vmatprep.subr.mxu0 0.0
    %650 = vmatpush1.msra.mxu0 %v606
    %651 = vmatprep.subr.mxu0 0.0
    %652 = vmatpush1.msra.mxu0 %v604
    %653 = vmatprep.subr.mxu0 0.0
    %654 = vmatpush2.msra.mxu0 0.0
    %655 = vmatprep.subr.mxu0 0.0
    %656 = vmatpush2.msra.mxu0 0.0
    %657 = vmatprep.subr.mxu0 0.0
    %658 = vmatpush2.msra.mxu0 0.0
    %659 = vmatprep.subr.mxu0 0.0
    %660 = vmatpush2.msra.mxu0 0.0
    %661 = vmatprep.subr.mxu0 0.0
    %662 = vmatpush2.msra.mxu0 0.0
    %663 = vmatprep.subr.mxu0 0.0
    %664 = vmatpush2.msra.mxu0 0.0
    %665 = vmatprep.subr.mxu0 0.0
    %666 = vmatpush2.msra.mxu0 0.0
    %667 = vmatprep.subr.mxu0 0.0
    %668 = vmatpush2.msra.mxu0 0.0
    %669 = vmatprep.subr.mxu0 0.0
    %670 = vmatpush2.msra.mxu0 0.0
    %671 = vmatprep.subr.mxu0 0.0
    %672 = vmatpush2.msra.mxu0 0.0
    %673 = vmatprep.subr.mxu0 0.0
    %674 = vmatpush2.msra.mxu0 0.0
    %675 = vmatprep.subr.mxu0 0.0
    %676 = vmatpush2.msra.mxu0 0.0
    %677 = vmatprep.subr.mxu0 0.0
    %678 = vmatpush2.msra.mxu0 0.0
    %679 = vmatprep.subr.mxu0 0.0
    %680 = vmatpush2.msra.mxu0 0.0
    %681 = vmatprep.subr.mxu0 0.0
    %682 = vmatpush2.msra.mxu0 0.0
    %683 = vmatprep.subr.mxu0 0.0
    %684 = vmatpush2.msra.mxu0 0.0
    %685 = vmatprep.mubr.f32.mxu0 0.0
    %686 = vmatmul.mubr.f32.gmra.mxu0 %v616
    %v687 = vpop.f32.mrf.mxu0
    %v688 = vadd.f32 %v598, %v687
    %v689 = vpop.f32.mrf.mxu0
    %690 = vmatprep.mubr.f32.mxu0 0.0
    %691 = vmatmul.mubr.f32.gmra.mxu0 %v619
    %v692 = vpop.f32.mrf.mxu0
    %v693 = vadd.f32 %v598, %v692
    %v694 = vpop.f32.mrf.mxu0
    %695 = vdwg.mxu0
    %v696 = vadd.f32 %v56, %v688
    %v697 = vadd.f32 %v57, %v693
    %v698 = vsel %vm80, %v696, 0.0
    %699 = vadd.xlane.f32.xlu0 %v698
    %v700 = vpop.xlane.xlu0 %699
    %v701 = vsel %vm80, %v697, 0.0
    %702 = vadd.xlane.f32.xlu0 %v701
    %v703 = vpop.xlane.xlu0 %702
    %v704 = vmul.f32 %v696, %v696
    %v705 = vmul.f32 %v697, %v697
    %v706 = vsel %vm80, %v704, 0.0
    %707 = vadd.xlane.f32.xlu0 %v706
    %v708 = vpop.xlane.xlu0 %707
    %v709 = vsel %vm80, %v705, 0.0
    %710 = vadd.xlane.f32.xlu0 %v709
    %v711 = vpop.xlane.xlu0 %710
    %v712 = vmul.f32 %v700, 0.03125
    %v713 = vmul.f32 %v703, 0.03125
    %v714 = vmul.f32 %v708, 0.03125
    %v715 = vmul.f32 %v711, 0.03125
    %v716 = vmul.f32 %v712, %v712
    %v717 = vmul.f32 %v713, %v713
    %v718 = vsub.f32 %v714, %v716
    %v719 = vsub.f32 %v715, %v717
    %v720 = vadd.f32 %v718, 1e-05
    %v721 = vadd.f32 %v719, 1e-05
    %v722 = vrsqrt.pop %v720
    %v723 = vrsqrt.pop %v721
    %v724 = vlaneseq
    %v725 = vshrl.u32 %v724, 7
    %v726 = vsub.s32 4, %v725
    %v727 = vrot.slane %v58, %v726
    %v728 = vmul.f32 %v722, %v727
    %v729 = vmul.f32 %v723, %v727
    %v730 = vmul.f32 %v696, %v728
    %v731 = vmul.f32 %v697, %v729
    %v732 = vmul.f32 %v712, %v728
    %v733 = vmul.f32 %v713, %v729
    %v734 = vlaneseq
    %v735 = vshrl.u32 %v734, 7
    %v736 = vsub.s32 5, %v735
    %v737 = vrot.slane %v58, %v736
    %v738 = vsub.f32 %v737, %v732
    %v739 = vsub.f32 %v737, %v733
    %v740 = vadd.f32 %v730, %v738
    %v741 = vadd.f32 %v731, %v739
    %v742 = vlaneseq
    %v743 = vshrl.u32 %v742, 7
    %v744 = vsub.s32 6, %v743
    %v745 = vrot.slane %v58, %v744
    %v747 = vsel %vm80, %v740, 0
    %v750 = vsel %vm80, %v741, 0
    %752 = vmatprep.subr.mxu0 0.0
    %753 = vmatpush1.msra.mxu0 0.0
    %754 = vmatprep.subr.mxu0 0.0
    %755 = vmatpush1.msra.mxu0 0.0
    %756 = vmatprep.subr.mxu0 0.0
    %757 = vmatpush1.msra.mxu0 0.0
    %758 = vmatprep.subr.mxu0 0.0
    %759 = vmatpush1.msra.mxu0 0.0
    %760 = vmatprep.subr.mxu0 0.0
    %761 = vmatpush1.msra.mxu0 0.0
    %762 = vmatprep.subr.mxu0 0.0
    %763 = vmatpush1.msra.mxu0 0.0
    %764 = vmatprep.subr.mxu0 0.0
    %765 = vmatpush1.msra.mxu0 0.0
    %766 = vmatprep.subr.mxu0 0.0
    %767 = vmatpush1.msra.mxu0 0.0
    %768 = vmatprep.subr.mxu0 0.0
    %769 = vmatpush1.msra.mxu0 0.0
    %770 = vmatprep.subr.mxu0 0.0
    %771 = vmatpush1.msra.mxu0 0.0
    %772 = vmatprep.subr.mxu0 0.0
    %773 = vmatpush1.msra.mxu0 0.0
    %774 = vmatprep.subr.mxu0 0.0
    %775 = vmatpush1.msra.mxu0 0.0
    %776 = vmatprep.subr.mxu0 0.0
    %777 = vmatpush1.msra.mxu0 %v67
    %778 = vmatprep.subr.mxu0 0.0
    %779 = vmatpush1.msra.mxu0 %v66
    %780 = vmatprep.subr.mxu0 0.0
    %781 = vmatpush1.msra.mxu0 %v65
    %782 = vmatprep.subr.mxu0 0.0
    %783 = vmatpush1.msra.mxu0 %v64
    %784 = vmatprep.subr.mxu0 0.0
    %785 = vmatpush2.msra.mxu0 0.0
    %786 = vmatprep.subr.mxu0 0.0
    %787 = vmatpush2.msra.mxu0 0.0
    %788 = vmatprep.subr.mxu0 0.0
    %789 = vmatpush2.msra.mxu0 0.0
    %790 = vmatprep.subr.mxu0 0.0
    %791 = vmatpush2.msra.mxu0 0.0
    %792 = vmatprep.subr.mxu0 0.0
    %793 = vmatpush2.msra.mxu0 0.0
    %794 = vmatprep.subr.mxu0 0.0
    %795 = vmatpush2.msra.mxu0 0.0
    %796 = vmatprep.subr.mxu0 0.0
    %797 = vmatpush2.msra.mxu0 0.0
    %798 = vmatprep.subr.mxu0 0.0
    %799 = vmatpush2.msra.mxu0 0.0
    %800 = vmatprep.subr.mxu0 0.0
    %801 = vmatpush2.msra.mxu0 0.0
    %802 = vmatprep.subr.mxu0 0.0
    %803 = vmatpush2.msra.mxu0 0.0
    %804 = vmatprep.subr.mxu0 0.0
    %805 = vmatpush2.msra.mxu0 0.0
    %806 = vmatprep.subr.mxu0 0.0
    %807 = vmatpush2.msra.mxu0 0.0
    %808 = vmatprep.subr.mxu0 0.0
    %809 = vmatpush2.msra.mxu0 0.0
    %810 = vmatprep.subr.mxu0 0.0
    %811 = vmatpush2.msra.mxu0 0.0
    %812 = vmatprep.subr.mxu0 0.0
    %813 = vmatpush2.msra.mxu0 0.0
    %814 = vmatprep.subr.mxu0 0.0
    %815 = vmatpush2.msra.mxu0 0.0
    %816 = vmatprep.mubr.f32.mxu0 0.0
    %817 = vmatmul.mubr.f32.gmra.mxu0 %v747
    %v818 = vpop.f32.mrf.mxu0
    %v819 = vadd.f32 %v745, %v818
    %v820 = vpop.f32.mrf.mxu0
    %821 = vmatprep.mubr.f32.mxu0 0.0
    %822 = vmatmul.mubr.f32.gmra.mxu0 %v750
    %v823 = vpop.f32.mrf.mxu0
    %v824 = vadd.f32 %v745, %v823
    %v825 = vpop.f32.mrf.mxu0
    %826 = vdwg.mxu0
    %v827 = vmul.f32 %v819, 0.5
    %v828 = vmul.f32 %v824, 0.5
    %v829 = vmul.f32 %v819, 0.70710677
    %v830 = vmul.f32 %v824, 0.70710677
    %v831 = verf.f32.pop %v829
    %v832 = verf.f32.pop %v830
    %v833 = vadd.f32 %v831, 1.0
    %v834 = vadd.f32 %v832, 1.0
    %v835 = vmul.f32 %v827, %v833
    %v836 = vmul.f32 %v828, %v834
    %vm837 = vcmask 523264
    %v838 = vsel %vm837, %v835, 0.0
    %839 = vadd.xlane.f32.xlu0 %v838
    %v840 = vpop.xlane.xlu0 %839
    %v841 = vsel %vm837, %v836, 0.0
    %842 = vadd.xlane.f32.xlu0 %v841
    %v843 = vpop.xlane.xlu0 %842
    %v844 = vmul.f32 %v835, %v835
    %v845 = vmul.f32 %v836, %v836
    %v846 = vsel %vm837, %v844, 0.0
    %847 = vadd.xlane.f32.xlu0 %v846
    %v848 = vpop.xlane.xlu0 %847
    %v849 = vsel %vm837, %v845, 0.0
    %850 = vadd.xlane.f32.xlu0 %v849
    %v851 = vpop.xlane.xlu0 %850
    %v852 = vmul.f32 %v840, 0.015625
    %v853 = vmul.f32 %v843, 0.015625
    %v854 = vmul.f32 %v848, 0.015625
    %v855 = vmul.f32 %v851, 0.015625
    %v856 = vmul.f32 %v852, %v852
    %v857 = vmul.f32 %v853, %v853
    %v858 = vsub.f32 %v854, %v856
    %v859 = vsub.f32 %v855, %v857
    %v860 = vadd.f32 %v858, 1e-05
    %v861 = vadd.f32 %v859, 1e-05
    %v862 = vrsqrt.pop %v860
    %v863 = vrsqrt.pop %v861
    %v864 = vlaneseq
    %v865 = vshrl.u32 %v864, 7
    %v866 = vsub.s32 7, %v865
    %v867 = vrot.slane %v58, %v866
    %v868 = vmul.f32 %v862, %v867
    %v869 = vmul.f32 %v863, %v867
    %v870 = vmul.f32 %v835, %v868
    %v871 = vmul.f32 %v836, %v869
    %v872 = vmul.f32 %v852, %v868
    %v873 = vmul.f32 %v853, %v869
    %v874 = vlaneseq
    %v875 = vshrl.u32 %v874, 7
    %v876 = vsub.s32 0, %v875
    %v877 = vrot.slane %v59, %v876
    %v878 = vsub.f32 %v877, %v872
    %v879 = vsub.f32 %v877, %v873
    %v880 = vadd.f32 %v870, %v878
    %v881 = vadd.f32 %v871, %v879
    %v882 = vlaneseq
    %v883 = vshrl.u32 %v882, 7
    %v884 = vsub.s32 1, %v883
    %v885 = vrot.slane %v59, %v884
    %886 = vrot.lane.b32.xlu0 %v64, 64
    %v887 = vpop.permute.xlu0 %886
    %888 = vrot.lane.b32.xlu0 %v65, 64
    %v889 = vpop.permute.xlu0 %888
    %890 = vrot.lane.b32.xlu0 %v66, 64
    %v891 = vpop.permute.xlu0 %890
    %892 = vrot.lane.b32.xlu0 %v67, 64
    %v893 = vpop.permute.xlu0 %892
    %894 = vrot.lane.b32.xlu0 %v68, 64
    %v895 = vpop.permute.xlu0 %894
    %896 = vrot.lane.b32.xlu0 %v69, 64
    %v897 = vpop.permute.xlu0 %896
    %898 = vrot.lane.b32.xlu0 %v70, 64
    %v899 = vpop.permute.xlu0 %898
    %900 = vrot.lane.b32.xlu0 %v71, 64
    %v901 = vpop.permute.xlu0 %900
    %v911 = vsel %vm837, %v880, 0
    %v914 = vsel %vm837, %v881, 0
    %916 = vmatprep.subr.mxu0 0.0
    %917 = vmatpush1.msra.mxu0 0.0
    %918 = vmatprep.subr.mxu0 0.0
    %919 = vmatpush1.msra.mxu0 0.0
    %920 = vmatprep.subr.mxu0 0.0
    %921 = vmatpush1.msra.mxu0 0.0
    %922 = vmatprep.subr.mxu0 0.0
    %923 = vmatpush1.msra.mxu0 0.0
    %924 = vmatprep.subr.mxu0 0.0
    %925 = vmatpush1.msra.mxu0 0.0
    %926 = vmatprep.subr.mxu0 0.0
    %927 = vmatpush1.msra.mxu0 0.0
    %928 = vmatprep.subr.mxu0 0.0
    %929 = vmatpush1.msra.mxu0 0.0
    %930 = vmatprep.subr.mxu0 0.0
    %931 = vmatpush1.msra.mxu0 0.0
    %932 = vmatprep.subr.mxu0 0.0
    %933 = vmatpush1.msra.mxu0 %v901
    %934 = vmatprep.subr.mxu0 0.0
    %935 = vmatpush1.msra.mxu0 %v899
    %936 = vmatprep.subr.mxu0 0.0
    %937 = vmatpush1.msra.mxu0 %v897
    %938 = vmatprep.subr.mxu0 0.0
    %939 = vmatpush1.msra.mxu0 %v895
    %940 = vmatprep.subr.mxu0 0.0
    %941 = vmatpush1.msra.mxu0 %v893
    %942 = vmatprep.subr.mxu0 0.0
    %943 = vmatpush1.msra.mxu0 %v891
    %944 = vmatprep.subr.mxu0 0.0
    %945 = vmatpush1.msra.mxu0 %v889
    %946 = vmatprep.subr.mxu0 0.0
    %947 = vmatpush1.msra.mxu0 %v887
    %948 = vmatprep.subr.mxu0 0.0
    %949 = vmatpush2.msra.mxu0 0.0
    %950 = vmatprep.subr.mxu0 0.0
    %951 = vmatpush2.msra.mxu0 0.0
    %952 = vmatprep.subr.mxu0 0.0
    %953 = vmatpush2.msra.mxu0 0.0
    %954 = vmatprep.subr.mxu0 0.0
    %955 = vmatpush2.msra.mxu0 0.0
    %956 = vmatprep.subr.mxu0 0.0
    %957 = vmatpush2.msra.mxu0 0.0
    %958 = vmatprep.subr.mxu0 0.0
    %959 = vmatpush2.msra.mxu0 0.0
    %960 = vmatprep.subr.mxu0 0.0
    %961 = vmatpush2.msra.mxu0 0.0
    %962 = vmatprep.subr.mxu0 0.0
    %963 = vmatpush2.msra.mxu0 0.0
    %964 = vmatprep.subr.mxu0 0.0
    %965 = vmatpush2.msra.mxu0 0.0
    %966 = vmatprep.subr.mxu0 0.0
    %967 = vmatpush2.msra.mxu0 0.0
    %968 = vmatprep.subr.mxu0 0.0
    %969 = vmatpush2.msra.mxu0 0.0
    %970 = vmatprep.subr.mxu0 0.0
    %971 = vmatpush2.msra.mxu0 0.0
    %972 = vmatprep.subr.mxu0 0.0
    %973 = vmatpush2.msra.mxu0 0.0
    %974 = vmatprep.subr.mxu0 0.0
    %975 = vmatpush2.msra.mxu0 0.0
    %976 = vmatprep.subr.mxu0 0.0
    %977 = vmatpush2.msra.mxu0 0.0
    %978 = vmatprep.subr.mxu0 0.0
    %979 = vmatpush2.msra.mxu0 0.0
    %980 = vmatprep.mubr.f32.mxu0 0.0
    %981 = vmatmul.mubr.f32.gmra.mxu0 %v911
    %v982 = vpop.f32.mrf.mxu0
    %v983 = vadd.f32 %v885, %v982
    %v984 = vpop.f32.mrf.mxu0
    %985 = vmatprep.mubr.f32.mxu0 0.0
    %986 = vmatmul.mubr.f32.gmra.mxu0 %v914
    %v987 = vpop.f32.mrf.mxu0
    %v988 = vadd.f32 %v885, %v987
    %v989 = vpop.f32.mrf.mxu0
    %990 = vdwg.mxu0
    %v991 = vadd.f32 %v696, %v983
    %v992 = vadd.f32 %v697, %v988
    %993 = vst.msk [vmem:[#allocation8] sm:$0xff] %vm80, %v991
    %994 = vst.msk [vmem:[#allocation8 + $0x8] sm:$0xff] %vm80, %v992
    // Predicated region
    $region26: #{tpu_custom_call.1} parent=1 // pred_check
      _
    $region27: #{tpu_custom_call.1} parent=1 // pred_check_branch
      %996 = sbr.rel (0) target = $region29
    $region28: #{tpu_custom_call.1} parent=1 // pred_region
      %s998 = ssub.s32 256, 256
      %999 = vsyncadd [#allocation4], %s998
      %s1000 = sshll.u32 [#allocation8], 4
      %s1001 = int_to_ptr.vmem [resolvable:$true] %s1000
      %1006 = dma.vmem_to_hbm [thread:$0]  %s1001, 256, %s3, [#allocation4], 128, 128, 8
    $region29: #{tpu_custom_call.1} parent=1 // pred_fallthru
      _
    // Predicated region
    $region30: #{tpu_custom_call.1} parent=1 // pred_check
      _
    $region31: #{tpu_custom_call.1} parent=1 // pred_check_branch
      %1008 = sbr.rel (0) target = $region33
    $region32: #{tpu_custom_call.1} parent=1 // pred_region
      %1009 = dma.done [#allocation4], 256
    $region33: #{tpu_custom_call.1} parent=1 // pred_fallthru
      _
    %1010 = vsyncpa [#allocation3], 1
    %1011 = vsyncpa [#allocation6], 1
    %1012 = vsyncpa [#allocation4], 1

</llo_original>
